<compile_context>
chip_gen: v6e
topology: v6e:2x2x1
jax: 0.10.0
libtpu: 0.0.40
codegen_flags: <defaults>
</compile_context>

<pallas_src>
import functools

import jax
import jax.numpy as jnp
import numpy as np
from jax.experimental import pallas as pl
from jax.experimental.pallas import tpu as pltpu

LANES = 128
SUBLANES = 8
NUM_SPLITS = 2  # parallel grid axis (only used where >1 TensorCore exists)


def _device_kind():
    try:
        return jax.devices()[0].device_kind.lower()
    except Exception:
        return ""


def _num_parallel_splits():
    """splits=1 on single-TensorCore chips (v5e/v6e); 2 elsewhere (v7x, megacore)."""
    kind = _device_kind()
    if ("v5 lite" in kind or "v5e" in kind or "v6 lite" in kind or "v6e" in kind):
        return 1
    return NUM_SPLITS


def _block_bytes():
    """Per-input block byte budget (double-buffered by the Pallas pipeline)."""
    kind = _device_kind()
    if "v7" in kind or "tpu7" in kind:
        # ~3.2 TB/s HBM per TC: 4 MiB blocks keep per-step overhead <15% of DMA.
        # 2 inputs x 2 buffers x 4 MiB = 16 MiB, under v7x's 32 MiB scoped VMEM.
        return 4 * 1024 * 1024
    # 2 MiB blocks -> 8 MiB total double-buffered: fits v5e's 16 MiB default.
    return 2 * 1024 * 1024


def _mse_kernel(t_ref, o_ref, out_ref, acc_ref, *, tile_rows):
    i = pl.program_id(1)  # sequential step within this split

    @pl.when(i == 0)
    def _():
        acc_ref[...] = jnp.zeros_like(acc_ref)

    t = t_ref[...].astype(jnp.float32)
    o = o_ref[...].astype(jnp.float32)

    # (t*m - o*m)^2 == m*(t-o)^2 for a 0/1 mask; no row-index masking needed
    # because the grid only visits full, fully-in-bounds tiles.
    diff = jnp.where(t > 0.001, t - o, 0.0)
    sq = diff * diff

    # Fold (tile_rows, 128) -> (8, 128): tile-preserving reshape + pure VPU adds
    # into the resident accumulator (the only cross-lane reduce is in the wrapper).
    acc_ref[...] += jnp.sum(
        sq.reshape(tile_rows // SUBLANES, SUBLANES, LANES), axis=0)

    @pl.when(i == pl.num_programs(1) - 1)
    def _():
        out_ref[...] = acc_ref[...]


def _masked_sq_sum(o, t):
    """Fused XLA path for tails / tiny inputs."""
    t = t.astype(jnp.float32)
    o = o.astype(jnp.float32)
    d = jnp.where(t > 0.001, t - o, 0.0)
    return jnp.sum(d * d)


@jax.jit
def mse_loss(outputs, target):
    """Masked MSE matching the PyTorch MSE.forward (mean over ALL elements)."""
    assert outputs.shape == target.shape
    n_elems = outputs.size

    o_flat = outputs.reshape(-1)
    t_flat = target.reshape(-1)

    itemsize = max(np.dtype(outputs.dtype).itemsize,
                   np.dtype(target.dtype).itemsize)
    # Row-dim alignment: 8 for f32, 16 for bf16, 32 for 8-bit (sublane packing).
    row_align = SUBLANES * max(1, 4 // itemsize)

    rows = n_elems // LANES
    # dtype-aware tile size: constant per-step byte footprint across dtypes.
    budget_rows = _block_bytes() // (LANES * itemsize)
    tile_rows = min(budget_rows, (rows // row_align) * row_align)

    if tile_rows == 0:
        # Too small to form even one aligned tile: plain fused XLA is faster.
        return (_masked_sq_sum(o_flat, t_flat)
                / jnp.float32(n_elems)).astype(jnp.float32)

    nb = rows // tile_rows                       # whole tiles available
    splits = _num_parallel_splits() if nb >= 2 else 1
    steps = nb // splits
    nb_used = splits * steps                     # tiles the kernel streams
    used = nb_used * tile_rows * LANES           # elements the kernel covers

    # Lane-aligned 2-D view.  When n_elems % 128 == 0 this is a free reshape of
    # the full array (no pad, no copy); the kernel only visits full tiles.
    if n_elems % LANES == 0:
        t2 = t_flat.reshape(rows, LANES)
        o2 = o_flat.reshape(rows, LANES)
    else:
        # Rare lane-misaligned size: one prefix-slice copy (still avoids the
        # old always-pad path for every 128-aligned size).
        t2 = t_flat[:rows * LANES].reshape(rows, LANES)
        o2 = o_flat[:rows * LANES].reshape(rows, LANES)

    kernel = functools.partial(_mse_kernel, tile_rows=tile_rows)

    def in_map(c, i):
        return (c * steps + i, 0)

    partials = pl.pallas_call(
        kernel,
        out_shape=jax.ShapeDtypeStruct((splits * SUBLANES, LANES), jnp.float32),
        grid_spec=pltpu.PrefetchScalarGridSpec(
            num_scalar_prefetch=0,
            grid=(splits, steps),
            in_specs=[
                pl.BlockSpec((tile_rows, LANES), in_map),
                pl.BlockSpec((tile_rows, LANES), in_map),
            ],
            out_specs=pl.BlockSpec((SUBLANES, LANES), lambda c, i: (c, 0)),
            scratch_shapes=[pltpu.VMEM((SUBLANES, LANES), jnp.float32)],
        ),
        compiler_params=pltpu.CompilerParams(
            dimension_semantics=("parallel", "arbitrary")),
    )(t2, o2)

    total = jnp.sum(partials)                    # single cross-lane reduce
    if used < n_elems:
        # Small tail (< splits*tile_rows*128 elements): the slice fuses into
        # this elementwise+reduce, so no extra HBM copy is materialized.
        total = total + _masked_sq_sum(o_flat[used:], t_flat[used:])

    return (total / jnp.float32(n_elems)).astype(jnp.float32)


if __name__ == "__main__":
    key = jax.random.PRNGKey(0)

    def reference(outputs, target):
        m = (target > 0.001).astype(jnp.float32)
        return jnp.mean((target * m - outputs * m) ** 2)

    shapes = [
        (2, 4, 16, 16),      # small NCHW demo shape (kernel path, tiny tile)
        (2, 3, 77, 53),      # lane-misaligned size -> exercises wrapper tail
        (1, 1, 1200, 1024),  # large enough for full-size tiles / parallel split
    ]
    for idx, shape in enumerate(shapes):
        k1, k2 = jax.random.split(jax.random.fold_in(key, idx))
        outputs = jax.random.normal(k1, shape, dtype=jnp.float32)
        # target mixes valid (>0.001) and invalid pixels
        target = jax.random.uniform(k2, shape, dtype=jnp.float32,
                                    minval=-0.5, maxval=1.0)

        loss = mse_loss(outputs, target)
        jax.block_until_ready(loss)

        ref = reference(outputs, target)
        assert np.allclose(np.asarray(loss), np.asarray(ref),
                           rtol=1e-4, atol=1e-7), (shape, float(loss), float(ref))

    print("KERNEL_OK")
</pallas_src>

<mosaic_0001>
module attributes {stable_mosaic.version = 11 : i64} {
  func.func @_mse_kernel(%arg0: i32, %arg1: i32, %arg2: memref<16x128xf32, #tpu.memory_space<vmem>>, %arg3: memref<16x128xf32, #tpu.memory_space<vmem>>, %arg4: memref<8x128xf32, #tpu.memory_space<vmem>>, %arg5: memref<8x128xf32, #tpu.memory_space<vmem>>) attributes {dimension_semantics = [#tpu.dimension_semantics<parallel>, #tpu.dimension_semantics<arbitrary>], iteration_bounds = array<i64: 1, 1>, scalar_prefetch = 0 : i64, scratch_operands = 1 : i64, tpu.core_type = #tpu.core_type<tc>, window_params = [{transform_indices = @transform_0, window_bounds = array<i64: 16, 128>}, {transform_indices = @transform_1, window_bounds = array<i64: 16, 128>}, {transform_indices = @transform_2, window_bounds = array<i64: 8, 128>}]} {
    %c0_i32 = arith.constant 0 : i32
    %0 = arith.cmpi eq, %arg1, %c0_i32 : i32
    %1 = arith.extui %0 : i1 to i32
    %c0_i32_0 = arith.constant 0 : i32
    %2 = arith.cmpi ne, %1, %c0_i32_0 : i32
    scf.if %2 {
      %cst_12 = arith.constant 0.000000e+00 : f32
      %19 = vector.broadcast %cst_12 : f32 to vector<8x128xf32>
      %c0_13 = arith.constant 0 : index
      %c0_14 = arith.constant 0 : index
      %20 = vector.load %arg5[%c0_13, %c0_14] : memref<8x128xf32, #tpu.memory_space<vmem>>, vector<8x128xf32>
      tpu.vector_store %arg5[%c0_13, %c0_14], %19 {strides = array<i32>} : memref<8x128xf32, #tpu.memory_space<vmem>>, vector<8x128xf32>,
    } else {
    }
    %c0 = arith.constant 0 : index
    %c0_1 = arith.constant 0 : index
    %3 = vector.load %arg2[%c0, %c0_1] : memref<16x128xf32, #tpu.memory_space<vmem>>, vector<16x128xf32>
    %c0_2 = arith.constant 0 : index
    %c0_3 = arith.constant 0 : index
    %4 = vector.load %arg3[%c0_2, %c0_3] : memref<16x128xf32, #tpu.memory_space<vmem>>, vector<16x128xf32>
    %cst = arith.constant 1.000000e-03 : f32
    %5 = vector.broadcast %cst : f32 to vector<16x128xf32>
    %6 = arith.cmpf ogt, %3, %5 : vector<16x128xf32>
    %7 = arith.subf %3, %4 : vector<16x128xf32>
    %cst_4 = arith.constant 0.000000e+00 : f32
    %8 = vector.broadcast %cst_4 : f32 to vector<16x128xf32>
    %9 = arith.select %6, %7, %8 : vector<16x128xi1>, vector<16x128xf32>
    %10 = arith.mulf %9, %9 : vector<16x128xf32>
    %c0_5 = arith.constant 0 : index
    %c0_6 = arith.constant 0 : index
    %11 = vector.load %arg5[%c0_5, %c0_6] : memref<8x128xf32, #tpu.memory_space<vmem>>, vector<8x128xf32>
    %12 = vector.shape_cast %10 : vector<16x128xf32> to vector<2x8x128xf32>
    %cst_7 = arith.constant dense<0.000000e+00> : vector<8x128xf32>
    %13 = vector.multi_reduction <add>, %12, %cst_7 [0] : vector<2x8x128xf32> to vector<8x128xf32>
    %14 = arith.addf %11, %13 : vector<8x128xf32>
    %c0_8 = arith.constant 0 : index
    %c0_9 = arith.constant 0 : index
    %15 = vector.load %arg5[%c0_8, %c0_9] : memref<8x128xf32, #tpu.memory_space<vmem>>, vector<8x128xf32>
    tpu.vector_store %arg5[%c0_8, %c0_9], %14 {strides = array<i32>} : memref<8x128xf32, #tpu.memory_space<vmem>>, vector<8x128xf32>,
    %c0_i32_10 = arith.constant 0 : i32
    %16 = arith.cmpi eq, %arg1, %c0_i32_10 : i32
    %17 = arith.extui %16 : i1 to i32
    %c0_i32_11 = arith.constant 0 : i32
    %18 = arith.cmpi ne, %17, %c0_i32_11 : i32
    scf.if %18 {
      %c0_12 = arith.constant 0 : index
      %c0_13 = arith.constant 0 : index
      %19 = vector.load %arg5[%c0_12, %c0_13] : memref<8x128xf32, #tpu.memory_space<vmem>>, vector<8x128xf32>
      %c0_14 = arith.constant 0 : index
      %c0_15 = arith.constant 0 : index
      %20 = vector.load %arg4[%c0_14, %c0_15] : memref<8x128xf32, #tpu.memory_space<vmem>>, vector<8x128xf32>
      tpu.vector_store %arg4[%c0_14, %c0_15], %19 {strides = array<i32>} : memref<8x128xf32, #tpu.memory_space<vmem>>, vector<8x128xf32>,
    } else {
    }
    return
  }
  func.func @transform_0(%arg0: i32, %arg1: i32) -> (i32, i32) {
    %c1_i32 = arith.constant 1 : i32
    %0 = arith.muli %arg0, %c1_i32 : i32
    %1 = arith.addi %0, %arg1 : i32
    %c0_i32 = arith.constant 0 : i32
    %c0_i32_0 = arith.constant 0 : i32
    return %1, %c0_i32 : i32, i32
  }
  func.func @transform_1(%arg0: i32, %arg1: i32) -> (i32, i32) {
    %c1_i32 = arith.constant 1 : i32
    %0 = arith.muli %arg0, %c1_i32 : i32
    %1 = arith.addi %0, %arg1 : i32
    %c0_i32 = arith.constant 0 : i32
    %c0_i32_0 = arith.constant 0 : i32
    return %1, %c0_i32 : i32, i32
  }
  func.func @transform_2(%arg0: i32, %arg1: i32) -> (i32, i32) {
    %c0_i32 = arith.constant 0 : i32
    %c0_i32_0 = arith.constant 0 : i32
    return %arg0, %c0_i32 : i32, i32
  }
}

</mosaic_0001>

<llo_original>
// kernel: mse_loss.1
$region0: #{mse_loss.1}
  #allocation0 [shape = 'u32[]', space=smem, size = 0x4, offset = 0x4, fixed_abs, tag = 'smem constant byte address 0x4 - core index']
  #allocation1 [shape = 'u32[144,128]{1,0:T(1,128)}', space=vmem, size = 0x12000, scoped, tag = 'internal scratch']
  #allocation2 [shape = 'f32[8,128]{1,0:T(8,128)}', space=vmem, size = 0x1000, scoped, tag = 'scratch operand']
  %s0 = inlined_call_operand.vmem [shape: f32[16,128], index: 0, kind: input, shape index: {}]
  %s1 = inlined_call_operand.vmem [shape: f32[16,128], index: 1, kind: input, shape index: {}]
  %s2 = inlined_call_operand.vmem [shape: f32[8,128], index: 2, kind: output, shape index: {}]
  %s3 = sld [smem:[#allocation0]]
  $region26: #{mse_loss.1} parent=0
    _
  %s5 = ssub.s32 1, %s3
  %s6 = scalar_select 0, %s5, %s3
  // Predicated region
  $region2: #{mse_loss.1} parent=0 // pred_check
    _
  $region3: #{mse_loss.1} parent=0 // pred_check_branch
    %8 = sbr.rel (0) target = $region5
  $region4: #{mse_loss.1} parent=0 // pred_region
    %s9 = sadd.s32 0, 0
    %s10 = smul.u32 2, %s9
    %p11 = scmp.lt.s32.totalorder %s10, 1
    %s12 = scalar_select %p11, %s10, 1
    %s13 = smul.addr %s12, 8
    %s14 = scalar_lea.vmem %s0, %s13
    %s15 = sadd.s32 0, 0
    %s16 = smul.u32 2, %s15
  $region5: #{mse_loss.1} parent=0 // pred_fallthru
    _
  // Predicated region
  $region6: #{mse_loss.1} parent=0 // pred_check
    _
  $region7: #{mse_loss.1} parent=0 // pred_check_branch
    %18 = sbr.rel (0) target = $region9
  $region8: #{mse_loss.1} parent=0 // pred_region
    %s19 = sadd.s32 0, 0
    %s20 = smul.u32 2, %s19
    %p21 = scmp.lt.s32.totalorder %s20, 1
    %s22 = scalar_select %p21, %s20, 1
    %s23 = smul.addr %s22, 8
    %s24 = scalar_lea.vmem %s1, %s23
    %s25 = sadd.s32 0, 0
    %s26 = smul.u32 2, %s25
  $region9: #{mse_loss.1} parent=0 // pred_fallthru
    _
  %s27 = sadd.s32 0, 0
  %s28 = smul.u32 2, %s27
  %p29 = scmp.lt.s32.totalorder %s28, 1
  %s30 = scalar_select %p29, %s28, 1
  %s31 = smul.addr %s30, 8
  %s32 = scalar_lea.vmem %s0, %s31
  %s33 = sadd.s32 0, 0
  %s34 = smul.u32 2, %s33
  %p35 = scmp.lt.s32.totalorder %s34, 1
  %s36 = scalar_select %p35, %s34, 1
  %s37 = smul.addr %s36, 8
  %s38 = scalar_lea.vmem %s1, %s37
  %s39 = sadd.s32 0, 0
  %s40 = smul.u32 2, %s39
  %p41 = scmp.lt.s32.totalorder %s40, 1
  %s42 = scalar_select %p41, %s40, 1
  %s43 = smul.addr %s42, 8
  %s44 = scalar_lea.vmem %s0, %s43
  %s45 = sadd.s32 0, 0
  %s46 = smul.u32 2, %s45
  %s47 = sadd.s32 0, 0
  %s48 = smul.u32 2, %s47
  %p49 = scmp.lt.s32.totalorder %s48, 1
  %s50 = scalar_select %p49, %s48, 1
  %s51 = smul.addr %s50, 8
  %s52 = scalar_lea.vmem %s1, %s51
  %s53 = sadd.s32 0, 0
  %s54 = smul.u32 2, %s53
  %p55 = scmp.eq.s32.totalorder 0, 0
  // Predicated region
  $region10: #{mse_loss.1} parent=0 // pred_check
    %p56 = pneg %p55
  $region11: #{mse_loss.1} parent=0 // pred_check_branch
    %58 = sbr.rel (%p56) target = $region13
  $region12: #{mse_loss.1} parent=0 // pred_region
    %59 = vst [vmem:[#allocation2] sm:$0xff] 0.0
  $region13: #{mse_loss.1} parent=0 // pred_fallthru
    _
  %v60 = vld [vmem:[%s44] sm:$0xff]
  %v61 = vld [vmem:[%s44 + $0x8] sm:$0xff]
  %v62 = vld [vmem:[%s52] sm:$0xff]
  %v63 = vld [vmem:[%s52 + $0x8] sm:$0xff]
  %vm64 = vcmp.gt.f32.partialorder %v60, 0.001
  %vm65 = vcmp.gt.f32.partialorder %v61, 0.001
  %v66 = vsub.f32 %v60, %v62
  %v67 = vsub.f32 %v61, %v63
  %v68 = vsel %vm64, %v66, 0.0
  %v69 = vsel %vm65, %v67, 0.0
  %v70 = vmul.f32 %v68, %v68
  %v71 = vmul.f32 %v69, %v69
  %v72 = vld [vmem:[#allocation2] sm:$0xff]
  %v73 = vadd.f32 %v70, %v71
  %v74 = vadd.f32 %v72, %v73
  %75 = vst [vmem:[#allocation2] sm:$0xff] %v74
  // Predicated region
  $region14: #{mse_loss.1} parent=0 // pred_check
    %p76 = pneg %p55
  $region15: #{mse_loss.1} parent=0 // pred_check_branch
    %78 = sbr.rel (%p76) target = $region17
  $region16: #{mse_loss.1} parent=0 // pred_region
    %v79 = vld [vmem:[#allocation2] sm:$0xff]
    %80 = vst [vmem:[%s2] sm:$0xff] %v79
  $region17: #{mse_loss.1} parent=0 // pred_fallthru
    _
  // Predicated region
  $region18: #{mse_loss.1} parent=0 // pred_check
    _
  $region19: #{mse_loss.1} parent=0 // pred_check_branch
    %82 = sbr.rel (0) target = $region21
  $region20: #{mse_loss.1} parent=0 // pred_region
    _
  $region21: #{mse_loss.1} parent=0 // pred_fallthru
    _
  // Predicated region
  $region22: #{mse_loss.1} parent=0 // pred_check
    _
  $region23: #{mse_loss.1} parent=0 // pred_check_branch
    %84 = sbr.rel (0) target = $region25
  $region24: #{mse_loss.1} parent=0 // pred_region
    _
  $region25: #{mse_loss.1} parent=0 // pred_fallthru
    _

</llo_original>
